<compile_context>
chip_gen: v7x
topology: tpu7x:2x2x1
jax: 0.10.0
libtpu: 0.0.40
codegen_flags: <defaults>
</compile_context>

<pallas_src>
import math

import jax
import jax.numpy as jnp
from jax.experimental import pallas as pl
from jax.experimental.pallas import tpu as pltpu


# ----------------------------------------------------------------------------
# Pallas kernel: full forward hot path (9 matmuls + ReLUs) for one batch tile.
# Weights arrive as bf16, biases as f32. Matmuls run bf16xbf16 -> f32 acc.
# ----------------------------------------------------------------------------
def context_to_sol_kernel(
    ctx_ref, f_ref,
    w1, b1, w2, b2, w3, b3, w4, b4, w5, b5, w6, b6,          # "net"
    wo1_f, wo1_e, bo1, wo2, bo2, wo3, bo3,                    # "output_net"
    out_ref,
):
    def lin(x, w_ref, b_ref):
        # bf16 operands on the MXU, f32 accumulation, f32 bias-add on the VPU.
        return (
            jnp.dot(x.astype(jnp.bfloat16), w_ref[...],
                    preferred_element_type=jnp.float32)
            + b_ref[...]
        )

    # embedding = self.net(context)   (6 Linear layers, ReLU after first 5)
    h = jax.nn.relu(lin(ctx_ref[...], w1, b1))
    h = jax.nn.relu(lin(h, w2, b2))
    h = jax.nn.relu(lin(h, w3, b3))
    h = jax.nn.relu(lin(h, w4, b4))
    h = jax.nn.relu(lin(h, w5, b5))
    emb = lin(h, w6, b6)              # last "net" layer: no ReLU

    # input_data = cat(f_flat, embedding); output_net(input_data)
    # cat-then-matmul == f @ W[:F] + emb @ W[F:]  (split weight rows).
    g = (
        jnp.dot(f_ref[...].astype(jnp.bfloat16), wo1_f[...],
                preferred_element_type=jnp.float32)
        + jnp.dot(emb.astype(jnp.bfloat16), wo1_e[...],
                  preferred_element_type=jnp.float32)
        + bo1[...]
    )
    g = jax.nn.relu(g)
    g = jax.nn.relu(lin(g, wo2, bo2))
    out_ref[...] = lin(g, wo3, bo3).astype(out_ref.dtype)


# ----------------------------------------------------------------------------
# Wrapper
# ----------------------------------------------------------------------------
def context_to_sol_forward(t, f, context, params, input_dim, *, tile_b_max=256):
    """Mirrors ContextToSol.forward(t, f, context). `t` is unused (as in torch)."""
    del t
    B = f.shape[0]
    out_dim = math.prod(input_dim[1:])
    latent_dim = context.shape[1]
    hidden_dim = params["w1"].shape[1]

    # Keep the arriving dtype through the DMA; only reshape here.
    f_flat = f.reshape(B, -1)

    # --- batch tiling --------------------------------------------------------
    if B <= tile_b_max:
        tile_b = B                      # single block == full dim (always legal)
        pad_b = B
    else:
        tile_b = tile_b_max             # 256: multiple of 8/128/256
        pad_b = pl.cdiv(B, tile_b) * tile_b

    ctx_p = context
    if pad_b != B:
        f_flat = jnp.pad(f_flat, ((0, pad_b - B), (0, 0)))
        ctx_p = jnp.pad(ctx_p, ((0, pad_b - B), (0, 0)))

    grid = (pad_b // tile_b,)

    # --- operands: bf16 weights (MXU-native), f32 biases --------------------
    wp = {
        k: (v.astype(jnp.bfloat16) if k.startswith("w") else v.astype(jnp.float32))
        for k, v in params.items()
    }
    weight_args = (
        wp["w1"], wp["b1"], wp["w2"], wp["b2"], wp["w3"], wp["b3"],
        wp["w4"], wp["b4"], wp["w5"], wp["b5"], wp["w6"], wp["b6"],
        wp["wo1_f"], wp["wo1_e"], wp["bo1"],
        wp["wo2"], wp["bo2"], wp["wo3"], wp["bo3"],
    )

    # --- BlockSpecs ----------------------------------------------------------
    def batch_spec(cols):
        return pl.BlockSpec((tile_b, cols), lambda i: (i, 0))

    def pinned_spec(shape):
        # Constant index map -> fetched once, VMEM-resident across all steps.
        return pl.BlockSpec(shape, lambda i: (0, 0))

    in_specs = (
        [batch_spec(latent_dim), batch_spec(out_dim)]
        + [pinned_spec(a.shape) for a in weight_args]
    )
    out_specs = pl.BlockSpec((tile_b, out_dim), lambda i: (i, 0))

    # --- cost estimate (advisory, lets XLA overlap surrounding ops) ----------
    H, L, F = hidden_dim, latent_dim, out_dim
    flops = 2 * pad_b * (L * H + 5 * H * H + (F + H) * H + H * H + H * F)
    bytes_accessed = (
        pad_b * L * ctx_p.dtype.itemsize
        + pad_b * F * f_flat.dtype.itemsize
        + sum(int(a.size) * a.dtype.itemsize for a in weight_args)
        + pad_b * F * 4  # f32 output
    )
    cost = pl.CostEstimate(flops=flops, transcendentals=0,
                           bytes_accessed=bytes_accessed)

    out_flat = pl.pallas_call(
        context_to_sol_kernel,
        out_shape=jax.ShapeDtypeStruct((pad_b, out_dim), jnp.float32),
        grid_spec=pltpu.PrefetchScalarGridSpec(
            num_scalar_prefetch=0,
            grid=grid,
            in_specs=in_specs,
            out_specs=out_specs,
        ),
        compiler_params=pltpu.CompilerParams(
            dimension_semantics=("parallel",),   # megacore on v7x
        ),
        cost_estimate=cost,
    )(ctx_p, f_flat, *weight_args)

    return out_flat[:B].reshape(B, *input_dim[1:])


# ----------------------------------------------------------------------------
# Deterministic parameter init (PyTorch nn.Linear-style uniform bounds).
# ----------------------------------------------------------------------------
def init_params(key, latent_dim, input_dim, hidden_dim):
    out_dim = math.prod(input_dim[1:])

    def linear(key, fan_in, fan_out):
        kw, kb = jax.random.split(key)
        bound = 1.0 / math.sqrt(fan_in)
        w = jax.random.uniform(kw, (fan_in, fan_out), jnp.float32, -bound, bound)
        b = jax.random.uniform(kb, (1, fan_out), jnp.float32, -bound, bound)
        return w, b

    keys = jax.random.split(key, 9)
    p = {}
    # net: latent -> hidden, then 5x hidden -> hidden
    p["w1"], p["b1"] = linear(keys[0], latent_dim, hidden_dim)
    p["w2"], p["b2"] = linear(keys[1], hidden_dim, hidden_dim)
    p["w3"], p["b3"] = linear(keys[2], hidden_dim, hidden_dim)
    p["w4"], p["b4"] = linear(keys[3], hidden_dim, hidden_dim)
    p["w5"], p["b5"] = linear(keys[4], hidden_dim, hidden_dim)
    p["w6"], p["b6"] = linear(keys[5], hidden_dim, hidden_dim)
    # output_net: (out_dim + hidden) -> hidden -> hidden -> out_dim
    # cat order in the module is (f, embedding): f multiplies the FIRST out_dim
    # rows of wo1 — keep this in sync when loading checkpoints.
    wo1, p["bo1"] = linear(keys[6], out_dim + hidden_dim, hidden_dim)
    p["wo1_f"] = wo1[:out_dim, :]
    p["wo1_e"] = wo1[out_dim:, :]
    p["wo2"], p["bo2"] = linear(keys[7], hidden_dim, hidden_dim)
    p["wo3"], p["bo3"] = linear(keys[8], hidden_dim, out_dim)
    return p


# ----------------------------------------------------------------------------
# Pure-JAX reference mirroring the kernel's mixed precision
# (bf16 matmul operands, f32 accumulation, f32 bias/ReLU).
# ----------------------------------------------------------------------------
def reference_forward(t, f, context, p, input_dim):
    del t
    B = f.shape[0]

    def mm(x, w):
        return jnp.dot(x.astype(jnp.bfloat16), w.astype(jnp.bfloat16),
                       preferred_element_type=jnp.float32)

    h = context
    for i in range(1, 7):
        h = mm(h, p[f"w{i}"]) + p[f"b{i}"]
        if i < 6:
            h = jax.nn.relu(h)
    f_flat = f.reshape(B, -1)
    g = mm(f_flat, p["wo1_f"]) + mm(h, p["wo1_e"]) + p["bo1"]
    g = jax.nn.relu(g)
    g = jax.nn.relu(mm(g, p["wo2"]) + p["bo2"])
    out = mm(g, p["wo3"]) + p["bo3"]
    return out.reshape(B, *input_dim[1:])


if __name__ == "__main__":
    # Small shapes consistent with the module.
    B = 2
    latent_dim = 16
    hidden_dim = 32   # NOTE: hidden_dim=128 in the model config would make the
                      # intermediate activations lane-dense (secondary win).
    input_dim = (B, 16, 16)            # module uses input_dim[1:] -> (16, 16)

    key = jax.random.PRNGKey(0)
    k_ctx, k_f, k_p, k_ctx2, k_f2 = jax.random.split(key, 5)

    context = jax.random.normal(k_ctx, (B, latent_dim), jnp.float32)
    f = jax.random.normal(k_f, (B, *input_dim[1:]), jnp.float32)
    t = jnp.zeros((), jnp.float32)     # unused, as in the PyTorch forward

    params = init_params(k_p, latent_dim, input_dim, hidden_dim)

    # --- check 1: tiny batch, single grid step -------------------------------
    out = context_to_sol_forward(t, f, context, params, input_dim)
    out = jax.block_until_ready(out)
    ref = reference_forward(t, f, context, params, input_dim)
    assert out.shape == (B, *input_dim[1:]), out.shape
    assert jnp.allclose(out, ref, atol=1e-3, rtol=1e-3), float(
        jnp.max(jnp.abs(out - ref))
    )

    # --- check 2: multi-step grid + batch padding path ------------------------
    B2 = 20
    context2 = jax.random.normal(k_ctx2, (B2, latent_dim), jnp.float32)
    f2 = jax.random.normal(k_f2, (B2, *input_dim[1:]), jnp.float32)
    out2 = context_to_sol_forward(
        t, f2, context2, params, (B2, *input_dim[1:]), tile_b_max=8
    )
    out2 = jax.block_until_ready(out2)
    ref2 = reference_forward(t, f2, context2, params, (B2, *input_dim[1:]))
    assert out2.shape == (B2, *input_dim[1:]), out2.shape
    assert jnp.allclose(out2, ref2, atol=1e-3, rtol=1e-3), float(
        jnp.max(jnp.abs(out2 - ref2))
    )

    print("KERNEL_OK")
</pallas_src>

<mosaic_0001>
module attributes {stable_mosaic.version = 11 : i64} {
  func.func @context_to_sol_kernel(%arg0: i32, %arg1: memref<2x16xf32, #tpu.memory_space<vmem>>, %arg2: memref<2x256xf32, #tpu.memory_space<vmem>>, %arg3: memref<16x32xbf16, #tpu.memory_space<vmem>>, %arg4: memref<1x32xf32, #tpu.memory_space<vmem>>, %arg5: memref<32x32xbf16, #tpu.memory_space<vmem>>, %arg6: memref<1x32xf32, #tpu.memory_space<vmem>>, %arg7: memref<32x32xbf16, #tpu.memory_space<vmem>>, %arg8: memref<1x32xf32, #tpu.memory_space<vmem>>, %arg9: memref<32x32xbf16, #tpu.memory_space<vmem>>, %arg10: memref<1x32xf32, #tpu.memory_space<vmem>>, %arg11: memref<32x32xbf16, #tpu.memory_space<vmem>>, %arg12: memref<1x32xf32, #tpu.memory_space<vmem>>, %arg13: memref<32x32xbf16, #tpu.memory_space<vmem>>, %arg14: memref<1x32xf32, #tpu.memory_space<vmem>>, %arg15: memref<256x32xbf16, #tpu.memory_space<vmem>>, %arg16: memref<32x32xbf16, #tpu.memory_space<vmem>>, %arg17: memref<1x32xf32, #tpu.memory_space<vmem>>, %arg18: memref<32x32xbf16, #tpu.memory_space<vmem>>, %arg19: memref<1x32xf32, #tpu.memory_space<vmem>>, %arg20: memref<32x256xbf16, #tpu.memory_space<vmem>>, %arg21: memref<1x256xf32, #tpu.memory_space<vmem>>, %arg22: memref<2x256xf32, #tpu.memory_space<vmem>>) attributes {dimension_semantics = [#tpu.dimension_semantics<parallel>], iteration_bounds = array<i64: 1>, scalar_prefetch = 0 : i64, scratch_operands = 0 : i64, tpu.core_type = #tpu.core_type<tc>, window_params = [{transform_indices = @transform_0, window_bounds = array<i64: 2, 16>}, {transform_indices = @transform_1, window_bounds = array<i64: 2, 256>}, {pipeline_mode = #tpu.pipeline_mode<synchronous>, transform_indices = @transform_2, window_bounds = array<i64: 16, 32>}, {pipeline_mode = #tpu.pipeline_mode<synchronous>, transform_indices = @transform_3, window_bounds = array<i64: 1, 32>}, {pipeline_mode = #tpu.pipeline_mode<synchronous>, transform_indices = @transform_4, window_bounds = array<i64: 32, 32>}, {pipeline_mode = #tpu.pipeline_mode<synchronous>, transform_indices = @transform_5, window_bounds = array<i64: 1, 32>}, {pipeline_mode = #tpu.pipeline_mode<synchronous>, transform_indices = @transform_6, window_bounds = array<i64: 32, 32>}, {pipeline_mode = #tpu.pipeline_mode<synchronous>, transform_indices = @transform_7, window_bounds = array<i64: 1, 32>}, {pipeline_mode = #tpu.pipeline_mode<synchronous>, transform_indices = @transform_8, window_bounds = array<i64: 32, 32>}, {pipeline_mode = #tpu.pipeline_mode<synchronous>, transform_indices = @transform_9, window_bounds = array<i64: 1, 32>}, {pipeline_mode = #tpu.pipeline_mode<synchronous>, transform_indices = @transform_10, window_bounds = array<i64: 32, 32>}, {pipeline_mode = #tpu.pipeline_mode<synchronous>, transform_indices = @transform_11, window_bounds = array<i64: 1, 32>}, {pipeline_mode = #tpu.pipeline_mode<synchronous>, transform_indices = @transform_12, window_bounds = array<i64: 32, 32>}, {pipeline_mode = #tpu.pipeline_mode<synchronous>, transform_indices = @transform_13, window_bounds = array<i64: 1, 32>}, {pipeline_mode = #tpu.pipeline_mode<synchronous>, transform_indices = @transform_14, window_bounds = array<i64: 256, 32>}, {pipeline_mode = #tpu.pipeline_mode<synchronous>, transform_indices = @transform_15, window_bounds = array<i64: 32, 32>}, {pipeline_mode = #tpu.pipeline_mode<synchronous>, transform_indices = @transform_16, window_bounds = array<i64: 1, 32>}, {pipeline_mode = #tpu.pipeline_mode<synchronous>, transform_indices = @transform_17, window_bounds = array<i64: 32, 32>}, {pipeline_mode = #tpu.pipeline_mode<synchronous>, transform_indices = @transform_18, window_bounds = array<i64: 1, 32>}, {pipeline_mode = #tpu.pipeline_mode<synchronous>, transform_indices = @transform_19, window_bounds = array<i64: 32, 256>}, {pipeline_mode = #tpu.pipeline_mode<synchronous>, transform_indices = @transform_20, window_bounds = array<i64: 1, 256>}, {transform_indices = @transform_21, window_bounds = array<i64: 2, 256>}]} {
    %c0 = arith.constant 0 : index
    %c0_0 = arith.constant 0 : index
    %0 = vector.load %arg1[%c0, %c0_0] : memref<2x16xf32, #tpu.memory_space<vmem>>, vector<2x16xf32>
    %1 = arith.truncf %0 : vector<2x16xf32> to vector<2x16xbf16>
    %c0_1 = arith.constant 0 : index
    %c0_2 = arith.constant 0 : index
    %2 = vector.load %arg3[%c0_1, %c0_2] : memref<16x32xbf16, #tpu.memory_space<vmem>>, vector<16x32xbf16>
    %cst = arith.constant dense<0.000000e+00> : vector<2x32xf32>
    %3 = tpu.matmul %1, %2, %cst {dimension_numbers = #tpu.dot_dimension_numbers<[1], [0], [0], [1], [0, 0, 1, 1], [], []>} : vector<2x16xbf16>, vector<16x32xbf16>, vector<2x32xf32> -> vector<2x32xf32>
    %c0_3 = arith.constant 0 : index
    %c0_4 = arith.constant 0 : index
    %4 = vector.load %arg4[%c0_3, %c0_4] : memref<1x32xf32, #tpu.memory_space<vmem>>, vector<1x32xf32>
    %5 = vector.broadcast %4 : vector<1x32xf32> to vector<2x32xf32>
    %6 = arith.addf %3, %5 : vector<2x32xf32>
    %cst_5 = arith.constant 0.000000e+00 : f32
    %7 = vector.broadcast %cst_5 : f32 to vector<2x32xf32>
    %8 = arith.maximumf %6, %7 : vector<2x32xf32>
    %9 = arith.truncf %8 : vector<2x32xf32> to vector<2x32xbf16>
    %c0_6 = arith.constant 0 : index
    %c0_7 = arith.constant 0 : index
    %10 = vector.load %arg5[%c0_6, %c0_7] : memref<32x32xbf16, #tpu.memory_space<vmem>>, vector<32x32xbf16>
    %cst_8 = arith.constant dense<0.000000e+00> : vector<2x32xf32>
    %11 = tpu.matmul %9, %10, %cst_8 {dimension_numbers = #tpu.dot_dimension_numbers<[1], [0], [0], [1], [0, 0, 1, 1], [], []>} : vector<2x32xbf16>, vector<32x32xbf16>, vector<2x32xf32> -> vector<2x32xf32>
    %c0_9 = arith.constant 0 : index
    %c0_10 = arith.constant 0 : index
    %12 = vector.load %arg6[%c0_9, %c0_10] : memref<1x32xf32, #tpu.memory_space<vmem>>, vector<1x32xf32>
    %13 = vector.broadcast %12 : vector<1x32xf32> to vector<2x32xf32>
    %14 = arith.addf %11, %13 : vector<2x32xf32>
    %cst_11 = arith.constant 0.000000e+00 : f32
    %15 = vector.broadcast %cst_11 : f32 to vector<2x32xf32>
    %16 = arith.maximumf %14, %15 : vector<2x32xf32>
    %17 = arith.truncf %16 : vector<2x32xf32> to vector<2x32xbf16>
    %c0_12 = arith.constant 0 : index
    %c0_13 = arith.constant 0 : index
    %18 = vector.load %arg7[%c0_12, %c0_13] : memref<32x32xbf16, #tpu.memory_space<vmem>>, vector<32x32xbf16>
    %cst_14 = arith.constant dense<0.000000e+00> : vector<2x32xf32>
    %19 = tpu.matmul %17, %18, %cst_14 {dimension_numbers = #tpu.dot_dimension_numbers<[1], [0], [0], [1], [0, 0, 1, 1], [], []>} : vector<2x32xbf16>, vector<32x32xbf16>, vector<2x32xf32> -> vector<2x32xf32>
    %c0_15 = arith.constant 0 : index
    %c0_16 = arith.constant 0 : index
    %20 = vector.load %arg8[%c0_15, %c0_16] : memref<1x32xf32, #tpu.memory_space<vmem>>, vector<1x32xf32>
    %21 = vector.broadcast %20 : vector<1x32xf32> to vector<2x32xf32>
    %22 = arith.addf %19, %21 : vector<2x32xf32>
    %cst_17 = arith.constant 0.000000e+00 : f32
    %23 = vector.broadcast %cst_17 : f32 to vector<2x32xf32>
    %24 = arith.maximumf %22, %23 : vector<2x32xf32>
    %25 = arith.truncf %24 : vector<2x32xf32> to vector<2x32xbf16>
    %c0_18 = arith.constant 0 : index
    %c0_19 = arith.constant 0 : index
    %26 = vector.load %arg9[%c0_18, %c0_19] : memref<32x32xbf16, #tpu.memory_space<vmem>>, vector<32x32xbf16>
    %cst_20 = arith.constant dense<0.000000e+00> : vector<2x32xf32>
    %27 = tpu.matmul %25, %26, %cst_20 {dimension_numbers = #tpu.dot_dimension_numbers<[1], [0], [0], [1], [0, 0, 1, 1], [], []>} : vector<2x32xbf16>, vector<32x32xbf16>, vector<2x32xf32> -> vector<2x32xf32>
    %c0_21 = arith.constant 0 : index
    %c0_22 = arith.constant 0 : index
    %28 = vector.load %arg10[%c0_21, %c0_22] : memref<1x32xf32, #tpu.memory_space<vmem>>, vector<1x32xf32>
    %29 = vector.broadcast %28 : vector<1x32xf32> to vector<2x32xf32>
    %30 = arith.addf %27, %29 : vector<2x32xf32>
    %cst_23 = arith.constant 0.000000e+00 : f32
    %31 = vector.broadcast %cst_23 : f32 to vector<2x32xf32>
    %32 = arith.maximumf %30, %31 : vector<2x32xf32>
    %33 = arith.truncf %32 : vector<2x32xf32> to vector<2x32xbf16>
    %c0_24 = arith.constant 0 : index
    %c0_25 = arith.constant 0 : index
    %34 = vector.load %arg11[%c0_24, %c0_25] : memref<32x32xbf16, #tpu.memory_space<vmem>>, vector<32x32xbf16>
    %cst_26 = arith.constant dense<0.000000e+00> : vector<2x32xf32>
    %35 = tpu.matmul %33, %34, %cst_26 {dimension_numbers = #tpu.dot_dimension_numbers<[1], [0], [0], [1], [0, 0, 1, 1], [], []>} : vector<2x32xbf16>, vector<32x32xbf16>, vector<2x32xf32> -> vector<2x32xf32>
    %c0_27 = arith.constant 0 : index
    %c0_28 = arith.constant 0 : index
    %36 = vector.load %arg12[%c0_27, %c0_28] : memref<1x32xf32, #tpu.memory_space<vmem>>, vector<1x32xf32>
    %37 = vector.broadcast %36 : vector<1x32xf32> to vector<2x32xf32>
    %38 = arith.addf %35, %37 : vector<2x32xf32>
    %cst_29 = arith.constant 0.000000e+00 : f32
    %39 = vector.broadcast %cst_29 : f32 to vector<2x32xf32>
    %40 = arith.maximumf %38, %39 : vector<2x32xf32>
    %41 = arith.truncf %40 : vector<2x32xf32> to vector<2x32xbf16>
    %c0_30 = arith.constant 0 : index
    %c0_31 = arith.constant 0 : index
    %42 = vector.load %arg13[%c0_30, %c0_31] : memref<32x32xbf16, #tpu.memory_space<vmem>>, vector<32x32xbf16>
    %cst_32 = arith.constant dense<0.000000e+00> : vector<2x32xf32>
    %43 = tpu.matmul %41, %42, %cst_32 {dimension_numbers = #tpu.dot_dimension_numbers<[1], [0], [0], [1], [0, 0, 1, 1], [], []>} : vector<2x32xbf16>, vector<32x32xbf16>, vector<2x32xf32> -> vector<2x32xf32>
    %c0_33 = arith.constant 0 : index
    %c0_34 = arith.constant 0 : index
    %44 = vector.load %arg14[%c0_33, %c0_34] : memref<1x32xf32, #tpu.memory_space<vmem>>, vector<1x32xf32>
    %45 = vector.broadcast %44 : vector<1x32xf32> to vector<2x32xf32>
    %46 = arith.addf %43, %45 : vector<2x32xf32>
    %c0_35 = arith.constant 0 : index
    %c0_36 = arith.constant 0 : index
    %47 = vector.load %arg2[%c0_35, %c0_36] : memref<2x256xf32, #tpu.memory_space<vmem>>, vector<2x256xf32>
    %48 = arith.truncf %47 : vector<2x256xf32> to vector<2x256xbf16>
    %c0_37 = arith.constant 0 : index
    %c0_38 = arith.constant 0 : index
    %49 = vector.load %arg15[%c0_37, %c0_38] : memref<256x32xbf16, #tpu.memory_space<vmem>>, vector<256x32xbf16>
    %cst_39 = arith.constant dense<0.000000e+00> : vector<2x32xf32>
    %50 = tpu.matmul %48, %49, %cst_39 {dimension_numbers = #tpu.dot_dimension_numbers<[1], [0], [0], [1], [0, 0, 1, 1], [], []>} : vector<2x256xbf16>, vector<256x32xbf16>, vector<2x32xf32> -> vector<2x32xf32>
    %51 = arith.truncf %46 : vector<2x32xf32> to vector<2x32xbf16>
    %c0_40 = arith.constant 0 : index
    %c0_41 = arith.constant 0 : index
    %52 = vector.load %arg16[%c0_40, %c0_41] : memref<32x32xbf16, #tpu.memory_space<vmem>>, vector<32x32xbf16>
    %cst_42 = arith.constant dense<0.000000e+00> : vector<2x32xf32>
    %53 = tpu.matmul %51, %52, %cst_42 {dimension_numbers = #tpu.dot_dimension_numbers<[1], [0], [0], [1], [0, 0, 1, 1], [], []>} : vector<2x32xbf16>, vector<32x32xbf16>, vector<2x32xf32> -> vector<2x32xf32>
    %54 = arith.addf %50, %53 : vector<2x32xf32>
    %c0_43 = arith.constant 0 : index
    %c0_44 = arith.constant 0 : index
    %55 = vector.load %arg17[%c0_43, %c0_44] : memref<1x32xf32, #tpu.memory_space<vmem>>, vector<1x32xf32>
    %56 = vector.broadcast %55 : vector<1x32xf32> to vector<2x32xf32>
    %57 = arith.addf %54, %56 : vector<2x32xf32>
    %cst_45 = arith.constant 0.000000e+00 : f32
    %58 = vector.broadcast %cst_45 : f32 to vector<2x32xf32>
    %59 = arith.maximumf %57, %58 : vector<2x32xf32>
    %60 = arith.truncf %59 : vector<2x32xf32> to vector<2x32xbf16>
    %c0_46 = arith.constant 0 : index
    %c0_47 = arith.constant 0 : index
    %61 = vector.load %arg18[%c0_46, %c0_47] : memref<32x32xbf16, #tpu.memory_space<vmem>>, vector<32x32xbf16>
    %cst_48 = arith.constant dense<0.000000e+00> : vector<2x32xf32>
    %62 = tpu.matmul %60, %61, %cst_48 {dimension_numbers = #tpu.dot_dimension_numbers<[1], [0], [0], [1], [0, 0, 1, 1], [], []>} : vector<2x32xbf16>, vector<32x32xbf16>, vector<2x32xf32> -> vector<2x32xf32>
    %c0_49 = arith.constant 0 : index
    %c0_50 = arith.constant 0 : index
    %63 = vector.load %arg19[%c0_49, %c0_50] : memref<1x32xf32, #tpu.memory_space<vmem>>, vector<1x32xf32>
    %64 = vector.broadcast %63 : vector<1x32xf32> to vector<2x32xf32>
    %65 = arith.addf %62, %64 : vector<2x32xf32>
    %cst_51 = arith.constant 0.000000e+00 : f32
    %66 = vector.broadcast %cst_51 : f32 to vector<2x32xf32>
    %67 = arith.maximumf %65, %66 : vector<2x32xf32>
    %68 = arith.truncf %67 : vector<2x32xf32> to vector<2x32xbf16>
    %c0_52 = arith.constant 0 : index
    %c0_53 = arith.constant 0 : index
    %69 = vector.load %arg20[%c0_52, %c0_53] : memref<32x256xbf16, #tpu.memory_space<vmem>>, vector<32x256xbf16>
    %cst_54 = arith.constant dense<0.000000e+00> : vector<2x256xf32>
    %70 = tpu.matmul %68, %69, %cst_54 {dimension_numbers = #tpu.dot_dimension_numbers<[1], [0], [0], [1], [0, 0, 1, 1], [], []>} : vector<2x32xbf16>, vector<32x256xbf16>, vector<2x256xf32> -> vector<2x256xf32>
    %c0_55 = arith.constant 0 : index
    %c0_56 = arith.constant 0 : index
    %71 = vector.load %arg21[%c0_55, %c0_56] : memref<1x256xf32, #tpu.memory_space<vmem>>, vector<1x256xf32>
    %72 = vector.broadcast %71 : vector<1x256xf32> to vector<2x256xf32>
    %73 = arith.addf %70, %72 : vector<2x256xf32>
    %c0_57 = arith.constant 0 : index
    %c0_58 = arith.constant 0 : index
    %74 = vector.load %arg22[%c0_57, %c0_58] : memref<2x256xf32, #tpu.memory_space<vmem>>, vector<2x256xf32>
    tpu.vector_store %arg22[%c0_57, %c0_58], %73 {strides = array<i32>} : memref<2x256xf32, #tpu.memory_space<vmem>>, vector<2x256xf32>,
    return
  }
  func.func @transform_0(%arg0: i32) -> (i32, i32) {
    %c0_i32 = arith.constant 0 : i32
    %c0_i32_0 = arith.constant 0 : i32
    return %arg0, %c0_i32 : i32, i32
  }
  func.func @transform_1(%arg0: i32) -> (i32, i32) {
    %c0_i32 = arith.constant 0 : i32
    %c0_i32_0 = arith.constant 0 : i32
    return %arg0, %c0_i32 : i32, i32
  }
  func.func @transform_2(%arg0: i32) -> (i32, i32) {
    %c0_i32 = arith.constant 0 : i32
    %c0_i32_0 = arith.constant 0 : i32
    %c0_i32_1 = arith.constant 0 : i32
    return %c0_i32, %c0_i32_0 : i32, i32
  }
  func.func @transform_3(%arg0: i32) -> (i32, i32) {
    %c0_i32 = arith.constant 0 : i32
    %c0_i32_0 = arith.constant 0 : i32
    %c0_i32_1 = arith.constant 0 : i32
    return %c0_i32, %c0_i32_0 : i32, i32
  }
  func.func @transform_4(%arg0: i32) -> (i32, i32) {
    %c0_i32 = arith.constant 0 : i32
    %c0_i32_0 = arith.constant 0 : i32
    %c0_i32_1 = arith.constant 0 : i32
    return %c0_i32, %c0_i32_0 : i32, i32
  }
  func.func @transform_5(%arg0: i32) -> (i32, i32) {
    %c0_i32 = arith.constant 0 : i32
    %c0_i32_0 = arith.constant 0 : i32
    %c0_i32_1 = arith.constant 0 : i32
    return %c0_i32, %c0_i32_0 : i32, i32
  }
  func.func @transform_6(%arg0: i32) -> (i32, i32) {
    %c0_i32 = arith.constant 0 : i32
    %c0_i32_0 = arith.constant 0 : i32
    %c0_i32_1 = arith.constant 0 : i32
    return %c0_i32, %c0_i32_0 : i32, i32
  }
  func.func @transform_7(%arg0: i32) -> (i32, i32) {
    %c0_i32 = arith.constant 0 : i32
    %c0_i32_0 = arith.constant 0 : i32
    %c0_i32_1 = arith.constant 0 : i32
    return %c0_i32, %c0_i32_0 : i32, i32
  }
  func.func @transform_8(%arg0: i32) -> (i32, i32) {
    %c0_i32 = arith.constant 0 : i32
    %c0_i32_0 = arith.constant 0 : i32
    %c0_i32_1 = arith.constant 0 : i32
    return %c0_i32, %c0_i32_0 : i32, i32
  }
  func.func @transform_9(%arg0: i32) -> (i32, i32) {
    %c0_i32 = arith.constant 0 : i32
    %c0_i32_0 = arith.constant 0 : i32
    %c0_i32_1 = arith.constant 0 : i32
    return %c0_i32, %c0_i32_0 : i32, i32
  }
  func.func @transform_10(%arg0: i32) -> (i32, i32) {
    %c0_i32 = arith.constant 0 : i32
    %c0_i32_0 = arith.constant 0 : i32
    %c0_i32_1 = arith.constant 0 : i32
    return %c0_i32, %c0_i32_0 : i32, i32
  }
  func.func @transform_11(%arg0: i32) -> (i32, i32) {
    %c0_i32 = arith.constant 0 : i32
    %c0_i32_0 = arith.constant 0 : i32
    %c0_i32_1 = arith.constant 0 : i32
    return %c0_i32, %c0_i32_0 : i32, i32
  }
  func.func @transform_12(%arg0: i32) -> (i32, i32) {
    %c0_i32 = arith.constant 0 : i32
    %c0_i32_0 = arith.constant 0 : i32
    %c0_i32_1 = arith.constant 0 : i32
    return %c0_i32, %c0_i32_0 : i32, i32
  }
  func.func @transform_13(%arg0: i32) -> (i32, i32) {
    %c0_i32 = arith.constant 0 : i32
    %c0_i32_0 = arith.constant 0 : i32
    %c0_i32_1 = arith.constant 0 : i32
    return %c0_i32, %c0_i32_0 : i32, i32
  }
  func.func @transform_14(%arg0: i32) -> (i32, i32) {
    %c0_i32 = arith.constant 0 : i32
    %c0_i32_0 = arith.constant 0 : i32
    %c0_i32_1 = arith.constant 0 : i32
    return %c0_i32, %c0_i32_0 : i32, i32
  }
  func.func @transform_15(%arg0: i32) -> (i32, i32) {
    %c0_i32 = arith.constant 0 : i32
    %c0_i32_0 = arith.constant 0 : i32
    %c0_i32_1 = arith.constant 0 : i32
    return %c0_i32, %c0_i32_0 : i32, i32
  }
  func.func @transform_16(%arg0: i32) -> (i32, i32) {
    %c0_i32 = arith.constant 0 : i32
    %c0_i32_0 = arith.constant 0 : i32
    %c0_i32_1 = arith.constant 0 : i32
    return %c0_i32, %c0_i32_0 : i32, i32
  }
  func.func @transform_17(%arg0: i32) -> (i32, i32) {
    %c0_i32 = arith.constant 0 : i32
    %c0_i32_0 = arith.constant 0 : i32
    %c0_i32_1 = arith.constant 0 : i32
    return %c0_i32, %c0_i32_0 : i32, i32
  }
  func.func @transform_18(%arg0: i32) -> (i32, i32) {
    %c0_i32 = arith.constant 0 : i32
    %c0_i32_0 = arith.constant 0 : i32
    %c0_i32_1 = arith.constant 0 : i32
    return %c0_i32, %c0_i32_0 : i32, i32
  }
  func.func @transform_19(%arg0: i32) -> (i32, i32) {
    %c0_i32 = arith.constant 0 : i32
    %c0_i32_0 = arith.constant 0 : i32
    %c0_i32_1 = arith.constant 0 : i32
    return %c0_i32, %c0_i32_0 : i32, i32
  }
  func.func @transform_20(%arg0: i32) -> (i32, i32) {
    %c0_i32 = arith.constant 0 : i32
    %c0_i32_0 = arith.constant 0 : i32
    %c0_i32_1 = arith.constant 0 : i32
    return %c0_i32, %c0_i32_0 : i32, i32
  }
  func.func @transform_21(%arg0: i32) -> (i32, i32) {
    %c0_i32 = arith.constant 0 : i32
    %c0_i32_0 = arith.constant 0 : i32
    return %arg0, %c0_i32 : i32, i32
  }
}

</mosaic_0001>

<llo_original>
// kernel: tpu_custom_call.1
$region0: #{tpu_custom_call.1}
  #allocation0 [shape = 'u32[]', space=smem, size = 0x4, offset = 0x4, fixed_abs, tag = 'smem constant byte address 0x4 - core index']
  #allocation1 [shape = 'u32[144,128]{1,0:T(1,128)}', space=vmem, size = 0x12000, scoped, tag = 'internal scratch']
  %s0 = inlined_call_operand.vmem [shape: f32[2,16], index: 0, kind: input, shape index: {}]
  %s1 = inlined_call_operand.vmem [shape: f32[2,256], index: 1, kind: input, shape index: {}]
  %s2 = inlined_call_operand.vmem [shape: bf16[16,32], index: 2, kind: input, shape index: {}]
  %s3 = inlined_call_operand.vmem [shape: f32[1,32], index: 3, kind: input, shape index: {}]
  %s4 = inlined_call_operand.vmem [shape: bf16[32,32], index: 4, kind: input, shape index: {}]
  %s5 = inlined_call_operand.vmem [shape: f32[1,32], index: 5, kind: input, shape index: {}]
  %s6 = inlined_call_operand.vmem [shape: bf16[32,32], index: 6, kind: input, shape index: {}]
  %s7 = inlined_call_operand.vmem [shape: f32[1,32], index: 7, kind: input, shape index: {}]
  %s8 = inlined_call_operand.vmem [shape: bf16[32,32], index: 8, kind: input, shape index: {}]
  %s9 = inlined_call_operand.vmem [shape: f32[1,32], index: 9, kind: input, shape index: {}]
  %s10 = inlined_call_operand.vmem [shape: bf16[32,32], index: 10, kind: input, shape index: {}]
  %s11 = inlined_call_operand.vmem [shape: f32[1,32], index: 11, kind: input, shape index: {}]
  %s12 = inlined_call_operand.vmem [shape: bf16[32,32], index: 12, kind: input, shape index: {}]
  %s13 = inlined_call_operand.vmem [shape: f32[1,32], index: 13, kind: input, shape index: {}]
  %s14 = inlined_call_operand.vmem [shape: bf16[256,32], index: 14, kind: input, shape index: {}]
  %s15 = inlined_call_operand.vmem [shape: bf16[32,32], index: 15, kind: input, shape index: {}]
  %s16 = inlined_call_operand.vmem [shape: f32[1,32], index: 16, kind: input, shape index: {}]
  %s17 = inlined_call_operand.vmem [shape: bf16[32,32], index: 17, kind: input, shape index: {}]
  %s18 = inlined_call_operand.vmem [shape: f32[1,32], index: 18, kind: input, shape index: {}]
  %s19 = inlined_call_operand.vmem [shape: bf16[32,256], index: 19, kind: input, shape index: {}]
  %s20 = inlined_call_operand.vmem [shape: f32[1,256], index: 20, kind: input, shape index: {}]
  %s21 = inlined_call_operand.hbm [shape: f32[2,256], index: 21, kind: output, shape index: {}]
  %s22 = sld [smem:[#allocation0]]
  $region94: #{tpu_custom_call.1} parent=0
    _
  %s24 = ssub.s32 1, %s22
  %s25 = scalar_select 0, %s24, %s22
  $region1: #{tpu_custom_call.1} parent=0
    #allocation2 [shape = 'u8[2048]{0}', space=vmem, size = 0x800, scoped, tag = 'output window, operand 0, single buffered']
    #allocation3 [shape = 's32[1]{0}', space=sflag, size = 0x4, scoped, tag = 'scoped memory for tpu_custom_call.1']
    %26 = vsyncpa [#allocation3], 0
    // Predicated region
    $region2: #{tpu_custom_call.1} parent=1 // pred_check
      _
    $region3: #{tpu_custom_call.1} parent=1 // pred_check_branch
      %28 = sbr.rel (0) target = $region5
    $region4: #{tpu_custom_call.1} parent=1 // pred_region
      _
    $region5: #{tpu_custom_call.1} parent=1 // pred_fallthru
      _
    // Predicated region
    $region6: #{tpu_custom_call.1} parent=1 // pred_check
      _
    $region7: #{tpu_custom_call.1} parent=1 // pred_check_branch
      %30 = sbr.rel (0) target = $region9
    $region8: #{tpu_custom_call.1} parent=1 // pred_region
      _
    $region9: #{tpu_custom_call.1} parent=1 // pred_fallthru
      _
    // Predicated region
    $region10: #{tpu_custom_call.1} parent=1 // pred_check
      _
    $region11: #{tpu_custom_call.1} parent=1 // pred_check_branch
      %32 = sbr.rel (0) target = $region13
    $region12: #{tpu_custom_call.1} parent=1 // pred_region
      _
    $region13: #{tpu_custom_call.1} parent=1 // pred_fallthru
      _
    // Predicated region
    $region14: #{tpu_custom_call.1} parent=1 // pred_check
      _
    $region15: #{tpu_custom_call.1} parent=1 // pred_check_branch
      %34 = sbr.rel (0) target = $region17
    $region16: #{tpu_custom_call.1} parent=1 // pred_region
      _
    $region17: #{tpu_custom_call.1} parent=1 // pred_fallthru
      _
    // Predicated region
    $region18: #{tpu_custom_call.1} parent=1 // pred_check
      _
    $region19: #{tpu_custom_call.1} parent=1 // pred_check_branch
      %36 = sbr.rel (0) target = $region21
    $region20: #{tpu_custom_call.1} parent=1 // pred_region
      _
    $region21: #{tpu_custom_call.1} parent=1 // pred_fallthru
      _
    // Predicated region
    $region22: #{tpu_custom_call.1} parent=1 // pred_check
      _
    $region23: #{tpu_custom_call.1} parent=1 // pred_check_branch
      %38 = sbr.rel (0) target = $region25
    $region24: #{tpu_custom_call.1} parent=1 // pred_region
      _
    $region25: #{tpu_custom_call.1} parent=1 // pred_fallthru
      _
    // Predicated region
    $region26: #{tpu_custom_call.1} parent=1 // pred_check
      _
    $region27: #{tpu_custom_call.1} parent=1 // pred_check_branch
      %40 = sbr.rel (0) target = $region29
    $region28: #{tpu_custom_call.1} parent=1 // pred_region
      _
    $region29: #{tpu_custom_call.1} parent=1 // pred_fallthru
      _
    // Predicated region
    $region30: #{tpu_custom_call.1} parent=1 // pred_check
      _
    $region31: #{tpu_custom_call.1} parent=1 // pred_check_branch
      %42 = sbr.rel (0) target = $region33
    $region32: #{tpu_custom_call.1} parent=1 // pred_region
      _
    $region33: #{tpu_custom_call.1} parent=1 // pred_fallthru
      _
    // Predicated region
    $region34: #{tpu_custom_call.1} parent=1 // pred_check
      _
    $region35: #{tpu_custom_call.1} parent=1 // pred_check_branch
      %44 = sbr.rel (0) target = $region37
    $region36: #{tpu_custom_call.1} parent=1 // pred_region
      _
    $region37: #{tpu_custom_call.1} parent=1 // pred_fallthru
      _
    // Predicated region
    $region38: #{tpu_custom_call.1} parent=1 // pred_check
      _
    $region39: #{tpu_custom_call.1} parent=1 // pred_check_branch
      %46 = sbr.rel (0) target = $region41
    $region40: #{tpu_custom_call.1} parent=1 // pred_region
      _
    $region41: #{tpu_custom_call.1} parent=1 // pred_fallthru
      _
    // Predicated region
    $region42: #{tpu_custom_call.1} parent=1 // pred_check
      _
    $region43: #{tpu_custom_call.1} parent=1 // pred_check_branch
      %48 = sbr.rel (0) target = $region45
    $region44: #{tpu_custom_call.1} parent=1 // pred_region
      _
    $region45: #{tpu_custom_call.1} parent=1 // pred_fallthru
      _
    // Predicated region
    $region46: #{tpu_custom_call.1} parent=1 // pred_check
      _
    $region47: #{tpu_custom_call.1} parent=1 // pred_check_branch
      %50 = sbr.rel (0) target = $region49
    $region48: #{tpu_custom_call.1} parent=1 // pred_region
      _
    $region49: #{tpu_custom_call.1} parent=1 // pred_fallthru
      _
    // Predicated region
    $region50: #{tpu_custom_call.1} parent=1 // pred_check
      _
    $region51: #{tpu_custom_call.1} parent=1 // pred_check_branch
      %52 = sbr.rel (0) target = $region53
    $region52: #{tpu_custom_call.1} parent=1 // pred_region
      _
    $region53: #{tpu_custom_call.1} parent=1 // pred_fallthru
      _
    // Predicated region
    $region54: #{tpu_custom_call.1} parent=1 // pred_check
      _
    $region55: #{tpu_custom_call.1} parent=1 // pred_check_branch
      %54 = sbr.rel (0) target = $region57
    $region56: #{tpu_custom_call.1} parent=1 // pred_region
      _
    $region57: #{tpu_custom_call.1} parent=1 // pred_fallthru
      _
    // Predicated region
    $region58: #{tpu_custom_call.1} parent=1 // pred_check
      _
    $region59: #{tpu_custom_call.1} parent=1 // pred_check_branch
      %56 = sbr.rel (0) target = $region61
    $region60: #{tpu_custom_call.1} parent=1 // pred_region
      _
    $region61: #{tpu_custom_call.1} parent=1 // pred_fallthru
      _
    // Predicated region
    $region62: #{tpu_custom_call.1} parent=1 // pred_check
      _
    $region63: #{tpu_custom_call.1} parent=1 // pred_check_branch
      %58 = sbr.rel (0) target = $region65
    $region64: #{tpu_custom_call.1} parent=1 // pred_region
      _
    $region65: #{tpu_custom_call.1} parent=1 // pred_fallthru
      _
    // Predicated region
    $region66: #{tpu_custom_call.1} parent=1 // pred_check
      _
    $region67: #{tpu_custom_call.1} parent=1 // pred_check_branch
      %60 = sbr.rel (0) target = $region69
    $region68: #{tpu_custom_call.1} parent=1 // pred_region
      _
    $region69: #{tpu_custom_call.1} parent=1 // pred_fallthru
      _
    // Predicated region
    $region70: #{tpu_custom_call.1} parent=1 // pred_check
      _
    $region71: #{tpu_custom_call.1} parent=1 // pred_check_branch
      %62 = sbr.rel (0) target = $region73
    $region72: #{tpu_custom_call.1} parent=1 // pred_region
      _
    $region73: #{tpu_custom_call.1} parent=1 // pred_fallthru
      _
    // Predicated region
    $region74: #{tpu_custom_call.1} parent=1 // pred_check
      _
    $region75: #{tpu_custom_call.1} parent=1 // pred_check_branch
      %64 = sbr.rel (0) target = $region77
    $region76: #{tpu_custom_call.1} parent=1 // pred_region
      _
    $region77: #{tpu_custom_call.1} parent=1 // pred_fallthru
      _
    // Predicated region
    $region78: #{tpu_custom_call.1} parent=1 // pred_check
      _
    $region79: #{tpu_custom_call.1} parent=1 // pred_check_branch
      %66 = sbr.rel (0) target = $region81
    $region80: #{tpu_custom_call.1} parent=1 // pred_region
      _
    $region81: #{tpu_custom_call.1} parent=1 // pred_fallthru
      _
    // Predicated region
    $region82: #{tpu_custom_call.1} parent=1 // pred_check
      _
    $region83: #{tpu_custom_call.1} parent=1 // pred_check_branch
      %68 = sbr.rel (0) target = $region85
    $region84: #{tpu_custom_call.1} parent=1 // pred_region
      _
    $region85: #{tpu_custom_call.1} parent=1 // pred_fallthru
      _
    %v70 = vld [vmem:[%s0] sm:$0x3]
    %v71 = vpack.c.bf16 %v70, %v70
    %v72 = vld [vmem:[%s2] sm:$0xf]
    %v73 = vld [vmem:[%s2 + $0x4] sm:$0xf]
    %v74 = vld [vmem:[%s3] sm:$0x1]
    %v76 = vlaneseq
    %v77 = vshrl.u32 %v76, 7
    %v78 = vsub.s32 0, %v77
    %v79 = vrot.slane %v74, %v78
    %v83 = vunpack.c.l.b16 %v72
    %v84 = vunpack.c.l.b16 %v73
    %v85 = vpack.c.b16 %v84, %v83
    %vm87 = vcmask 130048
    %v89 = vsel %vm87, %v71, 0
    %91 = vmatprep.subr.bf16.mxu0 0
    %92 = vmatpush1.bf16.msra.mxu0 %v85
    %93 = vmatprep.subr.bf16.mxu0 0
    %94 = vmatpush1.bf16.msra.mxu0 0
    %95 = vmatprep.subr.bf16.mxu0 0
    %96 = vmatpush1.bf16.msra.mxu0 0
    %97 = vmatprep.subr.bf16.mxu0 0
    %98 = vmatpush1.bf16.msra.mxu0 0
    %99 = vmatprep.subr.bf16.mxu0 0
    %100 = vmatpush1.bf16.msra.mxu0 0
    %101 = vmatprep.subr.bf16.mxu0 0
    %102 = vmatpush1.bf16.msra.mxu0 0
    %103 = vmatprep.subr.bf16.mxu0 0
    %104 = vmatpush1.bf16.msra.mxu0 0
    %105 = vmatprep.subr.bf16.mxu0 0
    %106 = vmatpush1.bf16.msra.mxu0 0
    %107 = vmatprep.subr.bf16.mxu0 0
    %108 = vmatpush1.bf16.msra.mxu0 0
    %109 = vmatprep.subr.bf16.mxu0 0
    %110 = vmatpush1.bf16.msra.mxu0 0
    %111 = vmatprep.subr.bf16.mxu0 0
    %112 = vmatpush1.bf16.msra.mxu0 0
    %113 = vmatprep.subr.bf16.mxu0 0
    %114 = vmatpush1.bf16.msra.mxu0 0
    %115 = vmatprep.subr.bf16.mxu0 0
    %116 = vmatpush1.bf16.msra.mxu0 0
    %117 = vmatprep.subr.bf16.mxu0 0
    %118 = vmatpush1.bf16.msra.mxu0 0
    %119 = vmatprep.subr.bf16.mxu0 0
    %120 = vmatpush1.bf16.msra.mxu0 0
    %121 = vmatprep.subr.bf16.mxu0 0
    %122 = vmatpush1.bf16.msra.mxu0 0
    %123 = vmatprep.mubr.bf16.mxu0 0
    %124 = vmatmul.mubr.bf16.gmra.mrb[0].mxu0 %v89
    %v125 = vpop.f32.mrb[0].mxu0
    %v126 = vadd.f32 %v79, %v125
    %v127 = vpop.f32.mrb[0].mxu0
    %v128 = vpop.f32.mrb[0].mxu0
    %v129 = vpop.f32.mrb[0].mxu0
    %130 = vdwg.mxu0
    %v131 = vmax.f32 %v126, 0.0
    %v132 = vpack.c.bf16 %v131, %v131
    %v133 = vld [vmem:[%s4] sm:$0xf]
    %v134 = vld [vmem:[%s4 + $0x4] sm:$0xf]
    %v135 = vld [vmem:[%s4 + $0x8] sm:$0xf]
    %v136 = vld [vmem:[%s4 + $0xc] sm:$0xf]
    %v137 = vld [vmem:[%s5] sm:$0x1]
    %v139 = vlaneseq
    %v140 = vshrl.u32 %v139, 7
    %v141 = vsub.s32 0, %v140
    %v142 = vrot.slane %v137, %v141
    %v148 = vunpack.c.l.b16 %v133
    %v149 = vunpack.c.l.b16 %v134
    %v150 = vunpack.c.l.b16 %v135
    %v151 = vunpack.c.l.b16 %v136
    %v152 = vpack.c.b16 %v149, %v148
    %v153 = vpack.c.b16 %v151, %v150
    %vm156 = vcmask 261120
    %v158 = vsel %vm156, %v132, 0
    %160 = vmatprep.subr.bf16.mxu0 0
    %161 = vmatpush1.bf16.msra.mxu0 %v152
    %162 = vmatprep.subr.bf16.mxu0 0
    %163 = vmatpush1.bf16.msra.mxu0 %v153
    %164 = vmatprep.subr.bf16.mxu0 0
    %165 = vmatpush1.bf16.msra.mxu0 0
    %166 = vmatprep.subr.bf16.mxu0 0
    %167 = vmatpush1.bf16.msra.mxu0 0
    %168 = vmatprep.subr.bf16.mxu0 0
    %169 = vmatpush1.bf16.msra.mxu0 0
    %170 = vmatprep.subr.bf16.mxu0 0
    %171 = vmatpush1.bf16.msra.mxu0 0
    %172 = vmatprep.subr.bf16.mxu0 0
    %173 = vmatpush1.bf16.msra.mxu0 0
    %174 = vmatprep.subr.bf16.mxu0 0
    %175 = vmatpush1.bf16.msra.mxu0 0
    %176 = vmatprep.subr.bf16.mxu0 0
    %177 = vmatpush1.bf16.msra.mxu0 0
    %178 = vmatprep.subr.bf16.mxu0 0
    %179 = vmatpush1.bf16.msra.mxu0 0
    %180 = vmatprep.subr.bf16.mxu0 0
    %181 = vmatpush1.bf16.msra.mxu0 0
    %182 = vmatprep.subr.bf16.mxu0 0
    %183 = vmatpush1.bf16.msra.mxu0 0
    %184 = vmatprep.subr.bf16.mxu0 0
    %185 = vmatpush1.bf16.msra.mxu0 0
    %186 = vmatprep.subr.bf16.mxu0 0
    %187 = vmatpush1.bf16.msra.mxu0 0
    %188 = vmatprep.subr.bf16.mxu0 0
    %189 = vmatpush1.bf16.msra.mxu0 0
    %190 = vmatprep.subr.bf16.mxu0 0
    %191 = vmatpush1.bf16.msra.mxu0 0
    %192 = vmatprep.mubr.bf16.mxu0 0
    %193 = vmatmul.mubr.bf16.gmra.mrb[0].mxu0 %v158
    %v194 = vpop.f32.mrb[0].mxu0
    %v195 = vadd.f32 %v142, %v194
    %v196 = vpop.f32.mrb[0].mxu0
    %v197 = vpop.f32.mrb[0].mxu0
    %v198 = vpop.f32.mrb[0].mxu0
    %199 = vdwg.mxu0
    %v200 = vmax.f32 %v195, 0.0
    %v201 = vpack.c.bf16 %v200, %v200
    %v202 = vld [vmem:[%s6] sm:$0xf]
    %v203 = vld [vmem:[%s6 + $0x4] sm:$0xf]
    %v204 = vld [vmem:[%s6 + $0x8] sm:$0xf]
    %v205 = vld [vmem:[%s6 + $0xc] sm:$0xf]
    %v206 = vld [vmem:[%s7] sm:$0x1]
    %v208 = vlaneseq
    %v209 = vshrl.u32 %v208, 7
    %v210 = vsub.s32 0, %v209
    %v211 = vrot.slane %v206, %v210
    %v217 = vunpack.c.l.b16 %v202
    %v218 = vunpack.c.l.b16 %v203
    %v219 = vunpack.c.l.b16 %v204
    %v220 = vunpack.c.l.b16 %v205
    %v221 = vpack.c.b16 %v218, %v217
    %v222 = vpack.c.b16 %v220, %v219
    %v226 = vsel %vm156, %v201, 0
    %228 = vmatprep.subr.bf16.mxu0 0
    %229 = vmatpush1.bf16.msra.mxu0 %v221
    %230 = vmatprep.subr.bf16.mxu0 0
    %231 = vmatpush1.bf16.msra.mxu0 %v222
    %232 = vmatprep.subr.bf16.mxu0 0
    %233 = vmatpush1.bf16.msra.mxu0 0
    %234 = vmatprep.subr.bf16.mxu0 0
    %235 = vmatpush1.bf16.msra.mxu0 0
    %236 = vmatprep.subr.bf16.mxu0 0
    %237 = vmatpush1.bf16.msra.mxu0 0
    %238 = vmatprep.subr.bf16.mxu0 0
    %239 = vmatpush1.bf16.msra.mxu0 0
    %240 = vmatprep.subr.bf16.mxu0 0
    %241 = vmatpush1.bf16.msra.mxu0 0
    %242 = vmatprep.subr.bf16.mxu0 0
    %243 = vmatpush1.bf16.msra.mxu0 0
    %244 = vmatprep.subr.bf16.mxu0 0
    %245 = vmatpush1.bf16.msra.mxu0 0
    %246 = vmatprep.subr.bf16.mxu0 0
    %247 = vmatpush1.bf16.msra.mxu0 0
    %248 = vmatprep.subr.bf16.mxu0 0
    %249 = vmatpush1.bf16.msra.mxu0 0
    %250 = vmatprep.subr.bf16.mxu0 0
    %251 = vmatpush1.bf16.msra.mxu0 0
    %252 = vmatprep.subr.bf16.mxu0 0
    %253 = vmatpush1.bf16.msra.mxu0 0
    %254 = vmatprep.subr.bf16.mxu0 0
    %255 = vmatpush1.bf16.msra.mxu0 0
    %256 = vmatprep.subr.bf16.mxu0 0
    %257 = vmatpush1.bf16.msra.mxu0 0
    %258 = vmatprep.subr.bf16.mxu0 0
    %259 = vmatpush1.bf16.msra.mxu0 0
    %260 = vmatprep.mubr.bf16.mxu0 0
    %261 = vmatmul.mubr.bf16.gmra.mrb[0].mxu0 %v226
    %v262 = vpop.f32.mrb[0].mxu0
    %v263 = vadd.f32 %v211, %v262
    %v264 = vpop.f32.mrb[0].mxu0
    %v265 = vpop.f32.mrb[0].mxu0
    %v266 = vpop.f32.mrb[0].mxu0
    %267 = vdwg.mxu0
    %v268 = vmax.f32 %v263, 0.0
    %v269 = vpack.c.bf16 %v268, %v268
    %v270 = vld [vmem:[%s8] sm:$0xf]
    %v271 = vld [vmem:[%s8 + $0x4] sm:$0xf]
    %v272 = vld [vmem:[%s8 + $0x8] sm:$0xf]
    %v273 = vld [vmem:[%s8 + $0xc] sm:$0xf]
    %v274 = vld [vmem:[%s9] sm:$0x1]
    %v276 = vlaneseq
    %v277 = vshrl.u32 %v276, 7
    %v278 = vsub.s32 0, %v277
    %v279 = vrot.slane %v274, %v278
    %v285 = vunpack.c.l.b16 %v270
    %v286 = vunpack.c.l.b16 %v271
    %v287 = vunpack.c.l.b16 %v272
    %v288 = vunpack.c.l.b16 %v273
    %v289 = vpack.c.b16 %v286, %v285
    %v290 = vpack.c.b16 %v288, %v287
    %v294 = vsel %vm156, %v269, 0
    %296 = vmatprep.subr.bf16.mxu0 0
    %297 = vmatpush1.bf16.msra.mxu0 %v289
    %298 = vmatprep.subr.bf16.mxu0 0
    %299 = vmatpush1.bf16.msra.mxu0 %v290
    %300 = vmatprep.subr.bf16.mxu0 0
    %301 = vmatpush1.bf16.msra.mxu0 0
    %302 = vmatprep.subr.bf16.mxu0 0
    %303 = vmatpush1.bf16.msra.mxu0 0
    %304 = vmatprep.subr.bf16.mxu0 0
    %305 = vmatpush1.bf16.msra.mxu0 0
    %306 = vmatprep.subr.bf16.mxu0 0
    %307 = vmatpush1.bf16.msra.mxu0 0
    %308 = vmatprep.subr.bf16.mxu0 0
    %309 = vmatpush1.bf16.msra.mxu0 0
    %310 = vmatprep.subr.bf16.mxu0 0
    %311 = vmatpush1.bf16.msra.mxu0 0
    %312 = vmatprep.subr.bf16.mxu0 0
    %313 = vmatpush1.bf16.msra.mxu0 0
    %314 = vmatprep.subr.bf16.mxu0 0
    %315 = vmatpush1.bf16.msra.mxu0 0
    %316 = vmatprep.subr.bf16.mxu0 0
    %317 = vmatpush1.bf16.msra.mxu0 0
    %318 = vmatprep.subr.bf16.mxu0 0
    %319 = vmatpush1.bf16.msra.mxu0 0
    %320 = vmatprep.subr.bf16.mxu0 0
    %321 = vmatpush1.bf16.msra.mxu0 0
    %322 = vmatprep.subr.bf16.mxu0 0
    %323 = vmatpush1.bf16.msra.mxu0 0
    %324 = vmatprep.subr.bf16.mxu0 0
    %325 = vmatpush1.bf16.msra.mxu0 0
    %326 = vmatprep.subr.bf16.mxu0 0
    %327 = vmatpush1.bf16.msra.mxu0 0
    %328 = vmatprep.mubr.bf16.mxu0 0
    %329 = vmatmul.mubr.bf16.gmra.mrb[0].mxu0 %v294
    %v330 = vpop.f32.mrb[0].mxu0
    %v331 = vadd.f32 %v279, %v330
    %v332 = vpop.f32.mrb[0].mxu0
    %v333 = vpop.f32.mrb[0].mxu0
    %v334 = vpop.f32.mrb[0].mxu0
    %335 = vdwg.mxu0
    %v336 = vmax.f32 %v331, 0.0
    %v337 = vpack.c.bf16 %v336, %v336
    %v338 = vld [vmem:[%s10] sm:$0xf]
    %v339 = vld [vmem:[%s10 + $0x4] sm:$0xf]
    %v340 = vld [vmem:[%s10 + $0x8] sm:$0xf]
    %v341 = vld [vmem:[%s10 + $0xc] sm:$0xf]
    %v342 = vld [vmem:[%s11] sm:$0x1]
    %v344 = vlaneseq
    %v345 = vshrl.u32 %v344, 7
    %v346 = vsub.s32 0, %v345
    %v347 = vrot.slane %v342, %v346
    %v353 = vunpack.c.l.b16 %v338
    %v354 = vunpack.c.l.b16 %v339
    %v355 = vunpack.c.l.b16 %v340
    %v356 = vunpack.c.l.b16 %v341
    %v357 = vpack.c.b16 %v354, %v353
    %v358 = vpack.c.b16 %v356, %v355
    %v362 = vsel %vm156, %v337, 0
    %364 = vmatprep.subr.bf16.mxu0 0
    %365 = vmatpush1.bf16.msra.mxu0 %v357
    %366 = vmatprep.subr.bf16.mxu0 0
    %367 = vmatpush1.bf16.msra.mxu0 %v358
    %368 = vmatprep.subr.bf16.mxu0 0
    %369 = vmatpush1.bf16.msra.mxu0 0
    %370 = vmatprep.subr.bf16.mxu0 0
    %371 = vmatpush1.bf16.msra.mxu0 0
    %372 = vmatprep.subr.bf16.mxu0 0
    %373 = vmatpush1.bf16.msra.mxu0 0
    %374 = vmatprep.subr.bf16.mxu0 0
    %375 = vmatpush1.bf16.msra.mxu0 0
    %376 = vmatprep.subr.bf16.mxu0 0
    %377 = vmatpush1.bf16.msra.mxu0 0
    %378 = vmatprep.subr.bf16.mxu0 0
    %379 = vmatpush1.bf16.msra.mxu0 0
    %380 = vmatprep.subr.bf16.mxu0 0
    %381 = vmatpush1.bf16.msra.mxu0 0
    %382 = vmatprep.subr.bf16.mxu0 0
    %383 = vmatpush1.bf16.msra.mxu0 0
    %384 = vmatprep.subr.bf16.mxu0 0
    %385 = vmatpush1.bf16.msra.mxu0 0
    %386 = vmatprep.subr.bf16.mxu0 0
    %387 = vmatpush1.bf16.msra.mxu0 0
    %388 = vmatprep.subr.bf16.mxu0 0
    %389 = vmatpush1.bf16.msra.mxu0 0
    %390 = vmatprep.subr.bf16.mxu0 0
    %391 = vmatpush1.bf16.msra.mxu0 0
    %392 = vmatprep.subr.bf16.mxu0 0
    %393 = vmatpush1.bf16.msra.mxu0 0
    %394 = vmatprep.subr.bf16.mxu0 0
    %395 = vmatpush1.bf16.msra.mxu0 0
    %396 = vmatprep.mubr.bf16.mxu0 0
    %397 = vmatmul.mubr.bf16.gmra.mrb[0].mxu0 %v362
    %v398 = vpop.f32.mrb[0].mxu0
    %v399 = vadd.f32 %v347, %v398
    %v400 = vpop.f32.mrb[0].mxu0
    %v401 = vpop.f32.mrb[0].mxu0
    %v402 = vpop.f32.mrb[0].mxu0
    %403 = vdwg.mxu0
    %v404 = vmax.f32 %v399, 0.0
    %v405 = vpack.c.bf16 %v404, %v404
    %v406 = vld [vmem:[%s12] sm:$0xf]
    %v407 = vld [vmem:[%s12 + $0x4] sm:$0xf]
    %v408 = vld [vmem:[%s12 + $0x8] sm:$0xf]
    %v409 = vld [vmem:[%s12 + $0xc] sm:$0xf]
    %v410 = vld [vmem:[%s13] sm:$0x1]
    %v412 = vlaneseq
    %v413 = vshrl.u32 %v412, 7
    %v414 = vsub.s32 0, %v413
    %v415 = vrot.slane %v410, %v414
    %v421 = vunpack.c.l.b16 %v406
    %v422 = vunpack.c.l.b16 %v407
    %v423 = vunpack.c.l.b16 %v408
    %v424 = vunpack.c.l.b16 %v409
    %v425 = vpack.c.b16 %v422, %v421
    %v426 = vpack.c.b16 %v424, %v423
    %v430 = vsel %vm156, %v405, 0
    %432 = vmatprep.subr.bf16.mxu0 0
    %433 = vmatpush1.bf16.msra.mxu0 %v425
    %434 = vmatprep.subr.bf16.mxu0 0
    %435 = vmatpush1.bf16.msra.mxu0 %v426
    %436 = vmatprep.subr.bf16.mxu0 0
    %437 = vmatpush1.bf16.msra.mxu0 0
    %438 = vmatprep.subr.bf16.mxu0 0
    %439 = vmatpush1.bf16.msra.mxu0 0
    %440 = vmatprep.subr.bf16.mxu0 0
    %441 = vmatpush1.bf16.msra.mxu0 0
    %442 = vmatprep.subr.bf16.mxu0 0
    %443 = vmatpush1.bf16.msra.mxu0 0
    %444 = vmatprep.subr.bf16.mxu0 0
    %445 = vmatpush1.bf16.msra.mxu0 0
    %446 = vmatprep.subr.bf16.mxu0 0
    %447 = vmatpush1.bf16.msra.mxu0 0
    %448 = vmatprep.subr.bf16.mxu0 0
    %449 = vmatpush1.bf16.msra.mxu0 0
    %450 = vmatprep.subr.bf16.mxu0 0
    %451 = vmatpush1.bf16.msra.mxu0 0
    %452 = vmatprep.subr.bf16.mxu0 0
    %453 = vmatpush1.bf16.msra.mxu0 0
    %454 = vmatprep.subr.bf16.mxu0 0
    %455 = vmatpush1.bf16.msra.mxu0 0
    %456 = vmatprep.subr.bf16.mxu0 0
    %457 = vmatpush1.bf16.msra.mxu0 0
    %458 = vmatprep.subr.bf16.mxu0 0
    %459 = vmatpush1.bf16.msra.mxu0 0
    %460 = vmatprep.subr.bf16.mxu0 0
    %461 = vmatpush1.bf16.msra.mxu0 0
    %462 = vmatprep.subr.bf16.mxu0 0
    %463 = vmatpush1.bf16.msra.mxu0 0
    %464 = vmatprep.mubr.bf16.mxu0 0
    %465 = vmatmul.mubr.bf16.gmra.mrb[0].mxu0 %v430
    %v466 = vpop.f32.mrb[0].mxu0
    %v467 = vadd.f32 %v415, %v466
    %v468 = vpop.f32.mrb[0].mxu0
    %v469 = vpop.f32.mrb[0].mxu0
    %v470 = vpop.f32.mrb[0].mxu0
    %471 = vdwg.mxu0
    %v472 = vld [vmem:[%s1] sm:$0xf]
    %v475 = vunpack.c.l.s4 1983009808
    %v476 = vunpack.c.0.s8 %v475
    %v477 = vlaneseq
    %v478 = vshrl.u32 %v477, 7
    %v479 = vsub.s32 %v476, %v478
    %v480 = vrot.slane %v472, %v479
    %v481 = vcombine.high %v480, %v480
    %v484 = vpack.c.bf16 %v480, %v480
    %v485 = vpack.c.bf16 %v481, %v481
    %v486 = vld [vmem:[%s14] sm:$0xf]
    %v487 = vld [vmem:[%s14 + $0x4] sm:$0xf]
    %v488 = vld [vmem:[%s14 + $0x8] sm:$0xf]
    %v489 = vld [vmem:[%s14 + $0xc] sm:$0xf]
    %v490 = vld [vmem:[%s14 + $0x10] sm:$0xf]
    %v491 = vld [vmem:[%s14 + $0x14] sm:$0xf]
    %v492 = vld [vmem:[%s14 + $0x18] sm:$0xf]
    %v493 = vld [vmem:[%s14 + $0x1c] sm:$0xf]
    %v494 = vld [vmem:[%s14 + $0x20] sm:$0xf]
    %v495 = vld [vmem:[%s14 + $0x24] sm:$0xf]
    %v496 = vld [vmem:[%s14 + $0x28] sm:$0xf]
    %v497 = vld [vmem:[%s14 + $0x2c] sm:$0xf]
    %v498 = vld [vmem:[%s14 + $0x30] sm:$0xf]
    %v499 = vld [vmem:[%s14 + $0x34] sm:$0xf]
    %v500 = vld [vmem:[%s14 + $0x38] sm:$0xf]
    %v501 = vld [vmem:[%s14 + $0x3c] sm:$0xf]
    %v502 = vld [vmem:[%s14 + $0x40] sm:$0xf]
    %v503 = vld [vmem:[%s14 + $0x44] sm:$0xf]
    %v504 = vld [vmem:[%s14 + $0x48] sm:$0xf]
    %v505 = vld [vmem:[%s14 + $0x4c] sm:$0xf]
    %v506 = vld [vmem:[%s14 + $0x50] sm:$0xf]
    %v507 = vld [vmem:[%s14 + $0x54] sm:$0xf]
    %v508 = vld [vmem:[%s14 + $0x58] sm:$0xf]
    %v509 = vld [vmem:[%s14 + $0x5c] sm:$0xf]
    %v510 = vld [vmem:[%s14 + $0x60] sm:$0xf]
    %v511 = vld [vmem:[%s14 + $0x64] sm:$0xf]
    %v512 = vld [vmem:[%s14 + $0x68] sm:$0xf]
    %v513 = vld [vmem:[%s14 + $0x6c] sm:$0xf]
    %v514 = vld [vmem:[%s14 + $0x70] sm:$0xf]
    %v515 = vld [vmem:[%s14 + $0x74] sm:$0xf]
    %v516 = vld [vmem:[%s14 + $0x78] sm:$0xf]
    %v517 = vld [vmem:[%s14 + $0x7c] sm:$0xf]
    %v518 = vpack.c.bf16 %v467, %v467
    %v519 = vld [vmem:[%s15] sm:$0xf]
    %v520 = vld [vmem:[%s15 + $0x4] sm:$0xf]
    %v521 = vld [vmem:[%s15 + $0x8] sm:$0xf]
    %v522 = vld [vmem:[%s15 + $0xc] sm:$0xf]
    %v527 = vunpack.c.l.b16 %v519
    %v528 = vunpack.c.l.b16 %v520
    %v529 = vunpack.c.l.b16 %v521
    %v530 = vunpack.c.l.b16 %v522
    %v531 = vpack.c.b16 %v528, %v527
    %v532 = vpack.c.b16 %v530, %v529
    %v536 = vsel %vm156, %v518, 0
    %538 = vmatprep.subr.bf16.mxu0 0
    %539 = vmatpush1.bf16.msra.mxu0 %v531
    %540 = vmatprep.subr.bf16.mxu0 0
    %541 = vmatpush1.bf16.msra.mxu0 %v532
    %542 = vmatprep.subr.bf16.mxu0 0
    %543 = vmatpush1.bf16.msra.mxu0 0
    %544 = vmatprep.subr.bf16.mxu0 0
    %545 = vmatpush1.bf16.msra.mxu0 0
    %546 = vmatprep.subr.bf16.mxu0 0
    %547 = vmatpush1.bf16.msra.mxu0 0
    %548 = vmatprep.subr.bf16.mxu0 0
    %549 = vmatpush1.bf16.msra.mxu0 0
    %550 = vmatprep.subr.bf16.mxu0 0
    %551 = vmatpush1.bf16.msra.mxu0 0
    %552 = vmatprep.subr.bf16.mxu0 0
    %553 = vmatpush1.bf16.msra.mxu0 0
    %554 = vmatprep.subr.bf16.mxu0 0
    %555 = vmatpush1.bf16.msra.mxu0 0
    %556 = vmatprep.subr.bf16.mxu0 0
    %557 = vmatpush1.bf16.msra.mxu0 0
    %558 = vmatprep.subr.bf16.mxu0 0
    %559 = vmatpush1.bf16.msra.mxu0 0
    %560 = vmatprep.subr.bf16.mxu0 0
    %561 = vmatpush1.bf16.msra.mxu0 0
    %562 = vmatprep.subr.bf16.mxu0 0
    %563 = vmatpush1.bf16.msra.mxu0 0
    %564 = vmatprep.subr.bf16.mxu0 0
    %565 = vmatpush1.bf16.msra.mxu0 0
    %566 = vmatprep.subr.bf16.mxu0 0
    %567 = vmatpush1.bf16.msra.mxu0 0
    %568 = vmatprep.subr.bf16.mxu0 0
    %569 = vmatpush1.bf16.msra.mxu0 0
    %570 = vmatprep.mubr.bf16.mxu0 0
    %571 = vmatmul.mubr.bf16.gmra.mrb[0].mxu0 %v536
    %v572 = vpop.f32.mrb[0].mxu0
    %v573 = vadd.f32 0.0, %v572
    %v574 = vpop.f32.mrb[0].mxu0
    %v575 = vpop.f32.mrb[0].mxu0
    %v576 = vpop.f32.mrb[0].mxu0
    %577 = vdwg.mxu0
    %v610 = vunpack.c.l.b16 %v486
    %v611 = vunpack.c.l.b16 %v487
    %v612 = vunpack.c.l.b16 %v488
    %v613 = vunpack.c.l.b16 %v489
    %v614 = vunpack.c.l.b16 %v490
    %v615 = vunpack.c.l.b16 %v491
    %v616 = vunpack.c.l.b16 %v492
    %v617 = vunpack.c.l.b16 %v493
    %v618 = vunpack.c.l.b16 %v494
    %v619 = vunpack.c.l.b16 %v495
    %v620 = vunpack.c.l.b16 %v496
    %v621 = vunpack.c.l.b16 %v497
    %v622 = vunpack.c.l.b16 %v498
    %v623 = vunpack.c.l.b16 %v499
    %v624 = vunpack.c.l.b16 %v500
    %v625 = vunpack.c.l.b16 %v501
    %v626 = vunpack.c.l.b16 %v502
    %v627 = vunpack.c.l.b16 %v503
    %v628 = vunpack.c.l.b16 %v504
    %v629 = vunpack.c.l.b16 %v505
    %v630 = vunpack.c.l.b16 %v506
    %v631 = vunpack.c.l.b16 %v507
    %v632 = vunpack.c.l.b16 %v508
    %v633 = vunpack.c.l.b16 %v509
    %v634 = vunpack.c.l.b16 %v510
    %v635 = vunpack.c.l.b16 %v511
    %v636 = vunpack.c.l.b16 %v512
    %v637 = vunpack.c.l.b16 %v513
    %v638 = vunpack.c.l.b16 %v514
    %v639 = vunpack.c.l.b16 %v515
    %v640 = vunpack.c.l.b16 %v516
    %v641 = vunpack.c.l.b16 %v517
    %v642 = vpack.c.b16 %v611, %v610
    %v643 = vpack.c.b16 %v613, %v612
    %v644 = vpack.c.b16 %v615, %v614
    %v645 = vpack.c.b16 %v617, %v616
    %v646 = vpack.c.b16 %v619, %v618
    %v647 = vpack.c.b16 %v621, %v620
    %v648 = vpack.c.b16 %v623, %v622
    %v649 = vpack.c.b16 %v625, %v624
    %v650 = vpack.c.b16 %v627, %v626
    %v651 = vpack.c.b16 %v629, %v628
    %v652 = vpack.c.b16 %v631, %v630
    %v653 = vpack.c.b16 %v633, %v632
    %v654 = vpack.c.b16 %v635, %v634
    %v655 = vpack.c.b16 %v637, %v636
    %v656 = vpack.c.b16 %v639, %v638
    %v657 = vpack.c.b16 %v641, %v640
    %674 = vmatprep.subr.bf16.mxu0 0
    %675 = vmatpush1.bf16.msra.mxu0 %v642
    %676 = vmatprep.subr.bf16.mxu0 0
    %677 = vmatpush1.bf16.msra.mxu0 %v643
    %678 = vmatprep.subr.bf16.mxu0 0
    %679 = vmatpush1.bf16.msra.mxu0 %v644
    %680 = vmatprep.subr.bf16.mxu0 0
    %681 = vmatpush1.bf16.msra.mxu0 %v645
    %682 = vmatprep.subr.bf16.mxu0 0
    %683 = vmatpush1.bf16.msra.mxu0 %v646
    %684 = vmatprep.subr.bf16.mxu0 0
    %685 = vmatpush1.bf16.msra.mxu0 %v647
    %686 = vmatprep.subr.bf16.mxu0 0
    %687 = vmatpush1.bf16.msra.mxu0 %v648
    %688 = vmatprep.subr.bf16.mxu0 0
    %689 = vmatpush1.bf16.msra.mxu0 %v649
    %690 = vmatprep.subr.bf16.mxu0 0
    %691 = vmatpush1.bf16.msra.mxu0 %v650
    %692 = vmatprep.subr.bf16.mxu0 0
    %693 = vmatpush1.bf16.msra.mxu0 %v651
    %694 = vmatprep.subr.bf16.mxu0 0
    %695 = vmatpush1.bf16.msra.mxu0 %v652
    %696 = vmatprep.subr.bf16.mxu0 0
    %697 = vmatpush1.bf16.msra.mxu0 %v653
    %698 = vmatprep.subr.bf16.mxu0 0
    %699 = vmatpush1.bf16.msra.mxu0 %v654
    %700 = vmatprep.subr.bf16.mxu0 0
    %701 = vmatpush1.bf16.msra.mxu0 %v655
    %702 = vmatprep.subr.bf16.mxu0 0
    %703 = vmatpush1.bf16.msra.mxu0 %v656
    %704 = vmatprep.subr.bf16.mxu0 0
    %705 = vmatpush1.bf16.msra.mxu0 %v657
    %706 = vmatprep.mubr.bf16.mxu0 %v485
    %707 = vmatmul.mubr.bf16.gmra.mrb[0].mxu0 %v484
    %v708 = vpop.f32.mrb[0].mxu0
    %v709 = vadd.f32 %v573, %v708
    %v710 = vpop.f32.mrb[0].mxu0
    %v711 = vpop.f32.mrb[0].mxu0
    %v712 = vpop.f32.mrb[0].mxu0
    %713 = vdwg.mxu0
    %v714 = vld [vmem:[%s16] sm:$0x1]
    %v716 = vlaneseq
    %v717 = vshrl.u32 %v716, 7
    %v718 = vsub.s32 0, %v717
    %v719 = vrot.slane %v714, %v718
    %v721 = vadd.f32 %v709, %v719
    %v722 = vmax.f32 %v721, 0.0
    %v723 = vpack.c.bf16 %v722, %v722
    %v724 = vld [vmem:[%s17] sm:$0xf]
    %v725 = vld [vmem:[%s17 + $0x4] sm:$0xf]
    %v726 = vld [vmem:[%s17 + $0x8] sm:$0xf]
    %v727 = vld [vmem:[%s17 + $0xc] sm:$0xf]
    %v728 = vld [vmem:[%s18] sm:$0x1]
    %v730 = vlaneseq
    %v731 = vshrl.u32 %v730, 7
    %v732 = vsub.s32 0, %v731
    %v733 = vrot.slane %v728, %v732
    %v739 = vunpack.c.l.b16 %v724
    %v740 = vunpack.c.l.b16 %v725
    %v741 = vunpack.c.l.b16 %v726
    %v742 = vunpack.c.l.b16 %v727
    %v743 = vpack.c.b16 %v740, %v739
    %v744 = vpack.c.b16 %v742, %v741
    %v748 = vsel %vm156, %v723, 0
    %750 = vmatprep.subr.bf16.mxu0 0
    %751 = vmatpush1.bf16.msra.mxu0 %v743
    %752 = vmatprep.subr.bf16.mxu0 0
    %753 = vmatpush1.bf16.msra.mxu0 %v744
    %754 = vmatprep.subr.bf16.mxu0 0
    %755 = vmatpush1.bf16.msra.mxu0 0
    %756 = vmatprep.subr.bf16.mxu0 0
    %757 = vmatpush1.bf16.msra.mxu0 0
    %758 = vmatprep.subr.bf16.mxu0 0
    %759 = vmatpush1.bf16.msra.mxu0 0
    %760 = vmatprep.subr.bf16.mxu0 0
    %761 = vmatpush1.bf16.msra.mxu0 0
    %762 = vmatprep.subr.bf16.mxu0 0
    %763 = vmatpush1.bf16.msra.mxu0 0
    %764 = vmatprep.subr.bf16.mxu0 0
    %765 = vmatpush1.bf16.msra.mxu0 0
    %766 = vmatprep.subr.bf16.mxu0 0
    %767 = vmatpush1.bf16.msra.mxu0 0
    %768 = vmatprep.subr.bf16.mxu0 0
    %769 = vmatpush1.bf16.msra.mxu0 0
    %770 = vmatprep.subr.bf16.mxu0 0
    %771 = vmatpush1.bf16.msra.mxu0 0
    %772 = vmatprep.subr.bf16.mxu0 0
    %773 = vmatpush1.bf16.msra.mxu0 0
    %774 = vmatprep.subr.bf16.mxu0 0
    %775 = vmatpush1.bf16.msra.mxu0 0
    %776 = vmatprep.subr.bf16.mxu0 0
    %777 = vmatpush1.bf16.msra.mxu0 0
    %778 = vmatprep.subr.bf16.mxu0 0
    %779 = vmatpush1.bf16.msra.mxu0 0
    %780 = vmatprep.subr.bf16.mxu0 0
    %781 = vmatpush1.bf16.msra.mxu0 0
    %782 = vmatprep.mubr.bf16.mxu0 0
    %783 = vmatmul.mubr.bf16.gmra.mrb[0].mxu0 %v748
    %v784 = vpop.f32.mrb[0].mxu0
    %v785 = vadd.f32 %v733, %v784
    %v786 = vpop.f32.mrb[0].mxu0
    %v787 = vpop.f32.mrb[0].mxu0
    %v788 = vpop.f32.mrb[0].mxu0
    %789 = vdwg.mxu0
    %v790 = vmax.f32 %v785, 0.0
    %v791 = vpack.c.bf16 %v790, %v790
    %v792 = vld [vmem:[%s19] sm:$0xff]
    %v793 = vld [vmem:[%s19 + $0x8] sm:$0xff]
    %v794 = vld [vmem:[%s19 + $0x10] sm:$0xff]
    %v795 = vld [vmem:[%s19 + $0x18] sm:$0xff]
    %v796 = vld [vmem:[%s20] sm:$0x3]
    %v798 = vlaneseq
    %v799 = vshrl.u32 %v798, 7
    %v800 = vsub.s32 0, %v799
    %v801 = vrot.slane %v796, %v800
    %v802 = vlaneseq
    %v803 = vshrl.u32 %v802, 7
    %v804 = vsub.s32 1, %v803
    %v805 = vrot.slane %v796, %v804
    %v812 = vunpack.c.l.b16 %v792
    %v813 = vunpack.c.h.b16 %v792
    %v814 = vunpack.c.l.b16 %v793
    %v815 = vunpack.c.h.b16 %v793
    %v816 = vunpack.c.l.b16 %v794
    %v817 = vunpack.c.h.b16 %v794
    %v818 = vunpack.c.l.b16 %v795
    %v819 = vunpack.c.h.b16 %v795
    %v820 = vpack.c.b16 %v814, %v812
    %v821 = vpack.c.b16 %v815, %v813
    %v822 = vpack.c.b16 %v818, %v816
    %v823 = vpack.c.b16 %v819, %v817
    %v829 = vsel %vm156, %v791, 0
    %831 = vmatprep.subr.bf16.mxu0 %v821
    %832 = vmatpush1.bf16.msra.mxu0 %v820
    %833 = vmatprep.subr.bf16.mxu0 %v823
    %834 = vmatpush1.bf16.msra.mxu0 %v822
    %835 = vmatprep.subr.bf16.mxu0 0
    %836 = vmatpush1.bf16.msra.mxu0 0
    %837 = vmatprep.subr.bf16.mxu0 0
    %838 = vmatpush1.bf16.msra.mxu0 0
    %839 = vmatprep.subr.bf16.mxu0 0
    %840 = vmatpush1.bf16.msra.mxu0 0
    %841 = vmatprep.subr.bf16.mxu0 0
    %842 = vmatpush1.bf16.msra.mxu0 0
    %843 = vmatprep.subr.bf16.mxu0 0
    %844 = vmatpush1.bf16.msra.mxu0 0
    %845 = vmatprep.subr.bf16.mxu0 0
    %846 = vmatpush1.bf16.msra.mxu0 0
    %847 = vmatprep.subr.bf16.mxu0 0
    %848 = vmatpush1.bf16.msra.mxu0 0
    %849 = vmatprep.subr.bf16.mxu0 0
    %850 = vmatpush1.bf16.msra.mxu0 0
    %851 = vmatprep.subr.bf16.mxu0 0
    %852 = vmatpush1.bf16.msra.mxu0 0
    %853 = vmatprep.subr.bf16.mxu0 0
    %854 = vmatpush1.bf16.msra.mxu0 0
    %855 = vmatprep.subr.bf16.mxu0 0
    %856 = vmatpush1.bf16.msra.mxu0 0
    %857 = vmatprep.subr.bf16.mxu0 0
    %858 = vmatpush1.bf16.msra.mxu0 0
    %859 = vmatprep.subr.bf16.mxu0 0
    %860 = vmatpush1.bf16.msra.mxu0 0
    %861 = vmatprep.subr.bf16.mxu0 0
    %862 = vmatpush1.bf16.msra.mxu0 0
    %863 = vmatprep.mubr.bf16.mxu0 0
    %864 = vmatmul.mubr.bf16.gmra.mrb[0].mxu0 %v829
    %v865 = vpop.f32.mrb[0].mxu0
    %v866 = vadd.f32 %v801, %v865
    %v867 = vpop.f32.mrb[0].mxu0
    %v868 = vadd.f32 %v805, %v867
    %v869 = vpop.f32.mrb[0].mxu0
    %v870 = vpop.f32.mrb[0].mxu0
    %871 = vdwg.mxu0
    %v874 = vcombine.low %v866, %v868
    %v876 = vunpack.c.l.s4 1983009808
    %v877 = vunpack.c.0.s8 %v876
    %v878 = vlaneseq
    %v879 = vshrl.u32 %v878, 7
    %v880 = vsub.s32 %v877, %v879
    %v881 = vrot.slane %v874, %v880
    %883 = vst [vmem:[#allocation2] sm:$0xf] %v881
    // Predicated region
    $region86: #{tpu_custom_call.1} parent=1 // pred_check
      _
    $region87: #{tpu_custom_call.1} parent=1 // pred_check_branch
      %885 = sbr.rel (0) target = $region89
    $region88: #{tpu_custom_call.1} parent=1 // pred_region
      %s887 = ssub.s32 64, 64
      %888 = vsyncadd [#allocation3], %s887
      %s890 = sshll.u32 [#allocation2], 4
      %s891 = int_to_ptr.vmem [resolvable:$true] %s890
      %893 = dma.vmem_to_hbm [thread:$0]  %s891, 64, %s21, [#allocation3]
    $region89: #{tpu_custom_call.1} parent=1 // pred_fallthru
      _
    // Predicated region
    $region90: #{tpu_custom_call.1} parent=1 // pred_check
      _
    $region91: #{tpu_custom_call.1} parent=1 // pred_check_branch
      %895 = sbr.rel (0) target = $region93
    $region92: #{tpu_custom_call.1} parent=1 // pred_region
      %896 = dma.done [#allocation3], 64
    $region93: #{tpu_custom_call.1} parent=1 // pred_fallthru
      _
    %897 = vsyncpa [#allocation3], 1

</llo_original>
